<compile_context>
chip_gen: v7x
topology: tpu7x:2x2x1
jax: 0.10.0
libtpu: 0.0.40
codegen_flags: <defaults>
</compile_context>

<pallas_src>
import jax
import jax.numpy as jnp
from jax.experimental import pallas as pl
from jax.experimental.pallas import tpu as pltpu


# Conservative for v7x (64 MiB physical per TensorCore), generous vs. the old
# 12/32 MiB caps on v5e/v6e (128 MiB physical).
_VMEM_LIMIT_BYTES = 48 * 1024 * 1024
_TILE_BUDGET_BYTES = 40 * 1024 * 1024


def attention_block_kernel(x_ref, wt_ref, bw_ref, v_ref, out_ref):
    # x_ref:  (TB, S, F)  streamed feature tile (f32 or bf16)
    # wt_ref: (F, M)      W weight, pre-transposed (same dtype as x)
    # bw_ref: (1, M)      W bias (f32)
    # v_ref:  (1, M)      V weight row (f32; O == 1)
    # out_ref:(TB, F)     pooled context vectors
    tb, s, f = x_ref.shape

    x = x_ref[...]                                           # (TB, S, F)

    # att = tanh(W(features)) -- one (TB*S, F) @ (F, M) MXU pass.
    # NOTE: reshape is layout-free when S is a multiple of the sublane pack
    # (8 for f32, 16 for bf16); otherwise it costs one in-VMEM relayout.
    att = jnp.tanh(
        jnp.dot(x.reshape(tb * s, f), wt_ref[...],
                preferred_element_type=jnp.float32)
        + bw_ref[...]
    )                                                        # (TB*S, M) f32

    # score = V(att) with O == 1: VPU multiply + lane reduce over M (no
    # 1-column MXU matmul).  b_V omitted: softmax over seq is shift-invariant.
    score = jnp.sum(att.reshape(tb, s, -1) * v_ref[...], axis=-1)   # (TB, S)

    # Lane-dense softmax over the sequence axis (S sits on the lane axis).
    m = jnp.max(score, axis=-1, keepdims=True)               # (TB, 1)
    e = jnp.exp(score - m)                                   # (TB, S)
    denom = jnp.sum(e, axis=-1, keepdims=True)               # (TB, 1)
    attn = e / denom                                         # exact: TB scalars only

    # context = sum over seq of attn * features (upcast on use; no persistent
    # f32 copy of the tile kept live across the matmul/softmax).
    ctx = jnp.sum(attn[:, :, None] * x.astype(jnp.float32), axis=1)  # (TB, F)
    out_ref[...] = ctx.astype(out_ref.dtype)


def _round_up(x, m):
    return ((x + m - 1) // m) * m


def _choose_batch_block(B, S, F, M, itemsize, budget_bytes):
    """Largest batch tile that fits the VMEM budget, targets >= ~1024 matmul
    rows per step, is 8-sublane aligned for multi-step grids, prefers a
    divisor of B (no wrapper-side pad pass) and nb >= 2 (v7x megacore) when
    that is free."""
    per_b = (2 * S * F * itemsize      # double-buffered streamed feature tile
             + 2 * S * M * 4           # att + score product (f32)
             + S * F * 4               # f32 upcast of x in the context multiply
             + 4 * S * 4)              # score / exp / attn row vectors
    weights = F * M * itemsize + 2 * M * 4
    avail = max(budget_bytes - weights, per_b)
    tb_vmem = max(1, avail // per_b)
    tb_rows = max(1, pl.cdiv(1024, S))          # >= ~1024 rows per MXU pass
    tb = min(int(tb_vmem), int(tb_rows), B)

    if tb >= B:
        # Whole batch fits in one step.  Prefer two steps (one per v7x
        # TensorCore) when that needs neither padding nor a sub-8 tile.
        if B >= 16 and B % 16 == 0:
            return B // 2
        return B

    # Multi-step grid: the (tb, F) output block needs tb % 8 == 0.
    tb = max(8, (tb // 8) * 8)
    # Prefer a tb that divides B so the wrapper never has to jnp.pad (an extra
    # HBM pass over the features).
    for t in range(tb, 7, -8):
        if B % t == 0:
            return t
    return tb


def prepare_attention_params(w_weight, w_bias, v_weight, v_bias,
                             matmul_dtype=jnp.float32):
    """Hoist per-call weight prep out of the hot path (call once at load time)."""
    M, F = w_weight.shape
    O = v_weight.shape[0]
    assert O == 1, "attn * features broadcast requires out_features == 1"
    wt = jnp.asarray(w_weight).T.astype(matmul_dtype)            # (F, M)
    bw = jnp.asarray(w_bias).reshape(1, M).astype(jnp.float32)   # (1, M)
    v_row = jnp.asarray(v_weight).reshape(1, M).astype(jnp.float32)
    del v_bias  # softmax(score + c) == softmax(score): bias is a no-op (O == 1)
    return wt, bw, v_row


def attention_block_apply(features, params, *, batch_block=None,
                          matmul_dtype=jnp.float32):
    wt, bw, v_row = params
    B, S, F = features.shape
    M = wt.shape[1]
    itemsize = jnp.dtype(matmul_dtype).itemsize

    if batch_block is None:
        tb = _choose_batch_block(B, S, F, M, itemsize, _TILE_BUDGET_BYTES)
    else:
        tb = min(batch_block, B)

    # Normalize tb for the (tb, F) output block: either tb == B (single step,
    # full-dim block) or tb a multiple of 8 (sublane-aligned unmasked stores).
    if tb >= B:
        tb, nb = B, 1
    else:
        tb = max(8, _round_up(tb, 8))
        if tb >= B:
            tb, nb = B, 1
        else:
            nb = pl.cdiv(B, tb)
    Bp = nb * tb

    # Cast / pad only when strictly required (both are extra HBM passes over x).
    x = features if features.dtype == jnp.dtype(matmul_dtype) \
        else features.astype(matmul_dtype)
    if Bp != B:
        # Padded rows produce finite scores -> zero context; sliced off below.
        # TODO(synk): for very large B, replace the pad with a scalar-prefetched
        # real-batch count + in-kernel masking of the ragged last block.
        x = jnp.pad(x, ((0, Bp - B), (0, 0), (0, 0)))

    grid_spec = pltpu.PrefetchScalarGridSpec(
        num_scalar_prefetch=0,
        grid=(nb,),
        in_specs=[
            pl.BlockSpec((tb, S, F), lambda b: (b, 0, 0)),   # streamed features
            pl.BlockSpec((F, M), lambda b: (0, 0)),          # resident weights
            pl.BlockSpec((1, M), lambda b: (0, 0)),
            pl.BlockSpec((1, M), lambda b: (0, 0)),
        ],
        out_specs=pl.BlockSpec((tb, F), lambda b: (b, 0)),
    )

    out = pl.pallas_call(
        attention_block_kernel,
        out_shape=jax.ShapeDtypeStruct((Bp, F), jnp.float32),
        grid_spec=grid_spec,
        compiler_params=pltpu.CompilerParams(
            dimension_semantics=("parallel",),   # megacore split on v7x
            vmem_limit_bytes=_VMEM_LIMIT_BYTES,
        ),
    )(x, wt, bw, v_row)

    return out[:B] if Bp != B else out


def attention_block(features, w_weight, w_bias, v_weight, v_bias, *,
                    batch_block=None, matmul_dtype=jnp.float32):
    # NOTE: in a real model, call prepare_attention_params once at param load.
    params = prepare_attention_params(w_weight, w_bias, v_weight, v_bias,
                                      matmul_dtype=matmul_dtype)
    return attention_block_apply(features, params, batch_block=batch_block,
                                 matmul_dtype=matmul_dtype)


def attention_block_ref(features, w_weight, w_bias, v_weight, v_bias):
    """Pure-JAX reference matching the PyTorch forward exactly (incl. b_V)."""
    att = jnp.tanh(jnp.einsum("bsf,mf->bsm", features, w_weight) + w_bias)
    score = jnp.einsum("bsm,om->bso", att, v_weight) + v_bias
    attn = jax.nn.softmax(score, axis=1)
    return jnp.sum(attn * features, axis=1)


if __name__ == "__main__":
    B, S, F, M, O = 2, 8, 32, 16, 1

    key = jax.random.PRNGKey(0)
    k_x, k_w, k_bw, k_v, k_bv, k_x2, k_x3 = jax.random.split(key, 7)

    features = jax.random.normal(k_x, (B, S, F), dtype=jnp.float32)
    w_weight = jax.random.uniform(k_w, (M, F), jnp.float32, -1.0, 1.0) / jnp.sqrt(F)
    w_bias   = jax.random.uniform(k_bw, (M,),  jnp.float32, -1.0, 1.0) / jnp.sqrt(F)
    v_weight = jax.random.uniform(k_v, (O, M), jnp.float32, -1.0, 1.0) / jnp.sqrt(M)
    v_bias   = jax.random.uniform(k_bv, (O,),  jnp.float32, -1.0, 1.0) / jnp.sqrt(M)

    # f32 path (default, single-step grid).  Exact softmax division; tolerance
    # leaves margin for MXU f32 pass decomposition on hardware.
    out = jax.block_until_ready(
        attention_block(features, w_weight, w_bias, v_weight, v_bias))
    ref = attention_block_ref(features, w_weight, w_bias, v_weight, v_bias)
    assert out.shape == (B, F), out.shape
    assert jnp.allclose(out, ref, atol=5e-3, rtol=5e-3), (
        f"max abs err {jnp.max(jnp.abs(out - ref))}")

    # Multi-step grid: explicit batch_block with B not divisible by the tile
    # (exercises the 8-aligned tile + padding + output-slice path).
    B2 = 20
    features2 = jax.random.normal(k_x2, (B2, S, F), dtype=jnp.float32)
    out2 = jax.block_until_ready(
        attention_block(features2, w_weight, w_bias, v_weight, v_bias,
                        batch_block=8))
    ref2 = attention_block_ref(features2, w_weight, w_bias, v_weight, v_bias)
    assert out2.shape == (B2, F), out2.shape
    assert jnp.allclose(out2, ref2, atol=5e-3, rtol=5e-3), (
        f"max abs err {jnp.max(jnp.abs(out2 - ref2))}")

    # Auto heuristic with B large enough to prefer a 2-step grid (v7x megacore).
    B3 = 32
    features3 = jax.random.normal(k_x3, (B3, S, F), dtype=jnp.float32)
    out3 = jax.block_until_ready(
        attention_block(features3, w_weight, w_bias, v_weight, v_bias))
    ref3 = attention_block_ref(features3, w_weight, w_bias, v_weight, v_bias)
    assert out3.shape == (B3, F), out3.shape
    assert jnp.allclose(out3, ref3, atol=5e-3, rtol=5e-3), (
        f"max abs err {jnp.max(jnp.abs(out3 - ref3))}")

    # Optional bf16 streaming path (bandwidth-bound v6e/v7x; in a real model
    # the features would already be bf16 in HBM).  Loose tolerance: this path
    # quantizes the matmul inputs, the reference stays f32.
    out4 = jax.block_until_ready(
        attention_block(features, w_weight, w_bias, v_weight, v_bias,
                        matmul_dtype=jnp.bfloat16))
    assert out4.shape == (B, F), out4.shape
    assert jnp.allclose(out4, ref, atol=1e-1, rtol=1e-1), (
        f"max abs err {jnp.max(jnp.abs(out4 - ref))}")

    print("KERNEL_OK")
</pallas_src>

<mosaic_0001>
module attributes {stable_mosaic.version = 11 : i64} {
  func.func @attention_block_kernel(%arg0: i32, %arg1: memref<2x8x32xf32, #tpu.memory_space<vmem>>, %arg2: memref<32x16xf32, #tpu.memory_space<vmem>>, %arg3: memref<1x16xf32, #tpu.memory_space<vmem>>, %arg4: memref<1x16xf32, #tpu.memory_space<vmem>>, %arg5: memref<2x32xf32, #tpu.memory_space<vmem>>) attributes {dimension_semantics = [#tpu.dimension_semantics<parallel>], iteration_bounds = array<i64: 1>, scalar_prefetch = 0 : i64, scratch_operands = 0 : i64, tpu.core_type = #tpu.core_type<tc>, window_params = [{transform_indices = @transform_0, window_bounds = array<i64: 2, 8, 32>}, {pipeline_mode = #tpu.pipeline_mode<synchronous>, transform_indices = @transform_1, window_bounds = array<i64: 32, 16>}, {pipeline_mode = #tpu.pipeline_mode<synchronous>, transform_indices = @transform_2, window_bounds = array<i64: 1, 16>}, {pipeline_mode = #tpu.pipeline_mode<synchronous>, transform_indices = @transform_3, window_bounds = array<i64: 1, 16>}, {transform_indices = @transform_4, window_bounds = array<i64: 2, 32>}]} {
    %c0 = arith.constant 0 : index
    %c0_0 = arith.constant 0 : index
    %c0_1 = arith.constant 0 : index
    %0 = vector.load %arg1[%c0, %c0_0, %c0_1] : memref<2x8x32xf32, #tpu.memory_space<vmem>>, vector<2x8x32xf32>
    %1 = vector.shape_cast %0 : vector<2x8x32xf32> to vector<16x32xf32>
    %c0_2 = arith.constant 0 : index
    %c0_3 = arith.constant 0 : index
    %2 = vector.load %arg2[%c0_2, %c0_3] : memref<32x16xf32, #tpu.memory_space<vmem>>, vector<32x16xf32>
    %cst = arith.constant dense<0.000000e+00> : vector<16x16xf32>
    %3 = tpu.matmul %1, %2, %cst {dimension_numbers = #tpu.dot_dimension_numbers<[1], [0], [0], [1], [0, 0, 1, 1], [], []>} : vector<16x32xf32>, vector<32x16xf32>, vector<16x16xf32> -> vector<16x16xf32>
    %c0_4 = arith.constant 0 : index
    %c0_5 = arith.constant 0 : index
    %4 = vector.load %arg3[%c0_4, %c0_5] : memref<1x16xf32, #tpu.memory_space<vmem>>, vector<1x16xf32>
    %5 = vector.broadcast %4 : vector<1x16xf32> to vector<16x16xf32>
    %6 = arith.addf %3, %5 : vector<16x16xf32>
    %7 = math.tanh %6 : vector<16x16xf32>
    %8 = vector.shape_cast %7 : vector<16x16xf32> to vector<2x8x16xf32>
    %c0_6 = arith.constant 0 : index
    %c0_7 = arith.constant 0 : index
    %9 = vector.load %arg4[%c0_6, %c0_7] : memref<1x16xf32, #tpu.memory_space<vmem>>, vector<1x16xf32>
    %10 = vector.shape_cast %9 : vector<1x16xf32> to vector<1x1x16xf32>
    %11 = vector.broadcast %10 : vector<1x1x16xf32> to vector<2x8x16xf32>
    %12 = arith.mulf %8, %11 : vector<2x8x16xf32>
    %cst_8 = arith.constant dense<0.000000e+00> : vector<2x8xf32>
    %13 = vector.multi_reduction <add>, %12, %cst_8 [2] : vector<2x8x16xf32> to vector<2x8xf32>
    %cst_9 = arith.constant dense<0xFF800000> : vector<2xf32>
    %14 = vector.multi_reduction <maximumf>, %13, %cst_9 [1] : vector<2x8xf32> to vector<2xf32>
    %15 = vector.shape_cast %14 : vector<2xf32> to vector<2x1xf32>
    %16 = vector.broadcast %15 : vector<2x1xf32> to vector<2x8xf32>
    %17 = arith.subf %13, %16 : vector<2x8xf32>
    %18 = math.exp %17 : vector<2x8xf32>
    %cst_10 = arith.constant dense<0.000000e+00> : vector<2xf32>
    %19 = vector.multi_reduction <add>, %18, %cst_10 [1] : vector<2x8xf32> to vector<2xf32>
    %20 = vector.shape_cast %19 : vector<2xf32> to vector<2x1xf32>
    %21 = vector.broadcast %20 : vector<2x1xf32> to vector<2x8xf32>
    %22 = arith.divf %18, %21 : vector<2x8xf32>
    %23 = vector.shape_cast %22 : vector<2x8xf32> to vector<2x8x1xf32>
    %24 = vector.broadcast %23 : vector<2x8x1xf32> to vector<2x8x32xf32>
    %25 = arith.mulf %24, %0 : vector<2x8x32xf32>
    %cst_11 = arith.constant dense<0.000000e+00> : vector<2x32xf32>
    %26 = vector.multi_reduction <add>, %25, %cst_11 [1] : vector<2x8x32xf32> to vector<2x32xf32>
    %c0_12 = arith.constant 0 : index
    %c0_13 = arith.constant 0 : index
    %27 = vector.load %arg5[%c0_12, %c0_13] : memref<2x32xf32, #tpu.memory_space<vmem>>, vector<2x32xf32>
    tpu.vector_store %arg5[%c0_12, %c0_13], %26 {strides = array<i32>} : memref<2x32xf32, #tpu.memory_space<vmem>>, vector<2x32xf32>,
    return
  }
  func.func @transform_0(%arg0: i32) -> (i32, i32, i32) {
    %c0_i32 = arith.constant 0 : i32
    %c0_i32_0 = arith.constant 0 : i32
    %c0_i32_1 = arith.constant 0 : i32
    return %arg0, %c0_i32, %c0_i32_0 : i32, i32, i32
  }
  func.func @transform_1(%arg0: i32) -> (i32, i32) {
    %c0_i32 = arith.constant 0 : i32
    %c0_i32_0 = arith.constant 0 : i32
    %c0_i32_1 = arith.constant 0 : i32
    return %c0_i32, %c0_i32_0 : i32, i32
  }
  func.func @transform_2(%arg0: i32) -> (i32, i32) {
    %c0_i32 = arith.constant 0 : i32
    %c0_i32_0 = arith.constant 0 : i32
    %c0_i32_1 = arith.constant 0 : i32
    return %c0_i32, %c0_i32_0 : i32, i32
  }
  func.func @transform_3(%arg0: i32) -> (i32, i32) {
    %c0_i32 = arith.constant 0 : i32
    %c0_i32_0 = arith.constant 0 : i32
    %c0_i32_1 = arith.constant 0 : i32
    return %c0_i32, %c0_i32_0 : i32, i32
  }
  func.func @transform_4(%arg0: i32) -> (i32, i32) {
    %c0_i32 = arith.constant 0 : i32
    %c0_i32_0 = arith.constant 0 : i32
    return %arg0, %c0_i32 : i32, i32
  }
}

</mosaic_0001>

<llo_original>
// kernel: tpu_custom_call.1
$region0: #{tpu_custom_call.1}
  #allocation0 [shape = 'u32[]', space=smem, size = 0x4, offset = 0x4, fixed_abs, tag = 'smem constant byte address 0x4 - core index']
  #allocation1 [shape = 'u32[144,128]{1,0:T(1,128)}', space=vmem, size = 0x12000, scoped, tag = 'internal scratch']
  %s0 = inlined_call_operand.vmem [shape: f32[2,8,32], index: 0, kind: input, shape index: {}]
  %s1 = inlined_call_operand.vmem [shape: f32[32,16], index: 1, kind: input, shape index: {}]
  %s2 = inlined_call_operand.vmem [shape: f32[1,16], index: 2, kind: input, shape index: {}]
  %s3 = inlined_call_operand.vmem [shape: f32[1,16], index: 3, kind: input, shape index: {}]
  %s4 = inlined_call_operand.hbm [shape: f32[2,32], index: 4, kind: output, shape index: {}]
  %s5 = sld [smem:[#allocation0]]
  $region26: #{tpu_custom_call.1} parent=0
    _
  %s7 = ssub.s32 1, %s5
  %s8 = scalar_select 0, %s7, %s5
  $region1: #{tpu_custom_call.1} parent=0
    #allocation2 [shape = 'u8[1024]{0}', space=vmem, size = 0x400, scoped, tag = 'output window, operand 0, single buffered']
    #allocation3 [shape = 's32[1]{0}', space=sflag, size = 0x4, scoped, tag = 'scoped memory for tpu_custom_call.1']
    %9 = vsyncpa [#allocation3], 0
    // Predicated region
    $region2: #{tpu_custom_call.1} parent=1 // pred_check
      _
    $region3: #{tpu_custom_call.1} parent=1 // pred_check_branch
      %11 = sbr.rel (0) target = $region5
    $region4: #{tpu_custom_call.1} parent=1 // pred_region
      _
    $region5: #{tpu_custom_call.1} parent=1 // pred_fallthru
      _
    // Predicated region
    $region6: #{tpu_custom_call.1} parent=1 // pred_check
      _
    $region7: #{tpu_custom_call.1} parent=1 // pred_check_branch
      %13 = sbr.rel (0) target = $region9
    $region8: #{tpu_custom_call.1} parent=1 // pred_region
      _
    $region9: #{tpu_custom_call.1} parent=1 // pred_fallthru
      _
    // Predicated region
    $region10: #{tpu_custom_call.1} parent=1 // pred_check
      _
    $region11: #{tpu_custom_call.1} parent=1 // pred_check_branch
      %15 = sbr.rel (0) target = $region13
    $region12: #{tpu_custom_call.1} parent=1 // pred_region
      _
    $region13: #{tpu_custom_call.1} parent=1 // pred_fallthru
      _
    // Predicated region
    $region14: #{tpu_custom_call.1} parent=1 // pred_check
      _
    $region15: #{tpu_custom_call.1} parent=1 // pred_check_branch
      %17 = sbr.rel (0) target = $region17
    $region16: #{tpu_custom_call.1} parent=1 // pred_region
      _
    $region17: #{tpu_custom_call.1} parent=1 // pred_fallthru
      _
    %v18 = vld [vmem:[%s0] sm:$0xff]
    %v19 = vld [vmem:[%s0 + $0x8] sm:$0xff]
    %v20 = vld [vmem:[%s1] sm:$0xff]
    %v21 = vld [vmem:[%s1 + $0x8] sm:$0xff]
    %v22 = vld [vmem:[%s1 + $0x10] sm:$0xff]
    %v23 = vld [vmem:[%s1 + $0x18] sm:$0xff]
    %v24 = vld [vmem:[%s2] sm:$0x1]
    %v26 = vlaneseq
    %v27 = vshrl.u32 %v26, 7
    %v28 = vsub.s32 0, %v27
    %v29 = vrot.slane %v24, %v28
    %vm31 = vcmask 261120
    %v33 = vsel %vm31, %v18, 0
    %v36 = vsel %vm31, %v19, 0
    %38 = vmatprep.subr.mxu0 0.0
    %39 = vmatpush1.msra.mxu0 %v20
    %40 = vmatprep.subr.mxu0 0.0
    %41 = vmatpush1.msra.mxu0 %v21
    %42 = vmatprep.subr.mxu0 0.0
    %43 = vmatpush1.msra.mxu0 %v22
    %44 = vmatprep.subr.mxu0 0.0
    %45 = vmatpush1.msra.mxu0 %v23
    %46 = vmatprep.subr.mxu0 0.0
    %47 = vmatpush1.msra.mxu0 0.0
    %48 = vmatprep.subr.mxu0 0.0
    %49 = vmatpush1.msra.mxu0 0.0
    %50 = vmatprep.subr.mxu0 0.0
    %51 = vmatpush1.msra.mxu0 0.0
    %52 = vmatprep.subr.mxu0 0.0
    %53 = vmatpush1.msra.mxu0 0.0
    %54 = vmatprep.subr.mxu0 0.0
    %55 = vmatpush1.msra.mxu0 0.0
    %56 = vmatprep.subr.mxu0 0.0
    %57 = vmatpush1.msra.mxu0 0.0
    %58 = vmatprep.subr.mxu0 0.0
    %59 = vmatpush1.msra.mxu0 0.0
    %60 = vmatprep.subr.mxu0 0.0
    %61 = vmatpush1.msra.mxu0 0.0
    %62 = vmatprep.subr.mxu0 0.0
    %63 = vmatpush1.msra.mxu0 0.0
    %64 = vmatprep.subr.mxu0 0.0
    %65 = vmatpush1.msra.mxu0 0.0
    %66 = vmatprep.subr.mxu0 0.0
    %67 = vmatpush1.msra.mxu0 0.0
    %68 = vmatprep.subr.mxu0 0.0
    %69 = vmatpush1.msra.mxu0 0.0
    %70 = vmatprep.subr.mxu0 0.0
    %71 = vmatpush1.msra.mxu0 0.0
    %72 = vmatprep.subr.mxu0 0.0
    %73 = vmatpush1.msra.mxu0 0.0
    %74 = vmatprep.subr.mxu0 0.0
    %75 = vmatpush1.msra.mxu0 0.0
    %76 = vmatprep.subr.mxu0 0.0
    %77 = vmatpush1.msra.mxu0 0.0
    %78 = vmatprep.subr.mxu0 0.0
    %79 = vmatpush1.msra.mxu0 0.0
    %80 = vmatprep.subr.mxu0 0.0
    %81 = vmatpush1.msra.mxu0 0.0
    %82 = vmatprep.subr.mxu0 0.0
    %83 = vmatpush1.msra.mxu0 0.0
    %84 = vmatprep.subr.mxu0 0.0
    %85 = vmatpush1.msra.mxu0 0.0
    %86 = vmatprep.subr.mxu0 0.0
    %87 = vmatpush1.msra.mxu0 0.0
    %88 = vmatprep.subr.mxu0 0.0
    %89 = vmatpush1.msra.mxu0 0.0
    %90 = vmatprep.subr.mxu0 0.0
    %91 = vmatpush1.msra.mxu0 0.0
    %92 = vmatprep.subr.mxu0 0.0
    %93 = vmatpush1.msra.mxu0 0.0
    %94 = vmatprep.subr.mxu0 0.0
    %95 = vmatpush1.msra.mxu0 0.0
    %96 = vmatprep.subr.mxu0 0.0
    %97 = vmatpush1.msra.mxu0 0.0
    %98 = vmatprep.subr.mxu0 0.0
    %99 = vmatpush1.msra.mxu0 0.0
    %100 = vmatprep.subr.mxu0 0.0
    %101 = vmatpush1.msra.mxu0 0.0
    %102 = vmatprep.mubr.f32.mxu0 0.0
    %103 = vmatmul.mubr.f32.gmra.mrb[0].mxu0 %v33
    %v104 = vpop.f32.mrb[0].mxu0
    %v105 = vadd.f32 %v29, %v104
    %v106 = vpop.f32.mrb[0].mxu0
    %107 = vmatprep.mubr.f32.mxu0 0.0
    %108 = vmatmul.mubr.f32.gmra.mrb[0].mxu0 %v36
    %v109 = vpop.f32.mrb[0].mxu0
    %v110 = vadd.f32 %v29, %v109
    %v111 = vpop.f32.mrb[0].mxu0
    %112 = vdwg.mxu0
    %v113 = vtanh.pop %v105
    %v114 = vtanh.pop %v110
    %v115 = vld [vmem:[%s3] sm:$0x1]
    %v117 = vlaneseq
    %v118 = vshrl.u32 %v117, 7
    %v119 = vsub.s32 0, %v118
    %v120 = vrot.slane %v115, %v119
    %v122 = vmul.f32 %v113, %v120
    %v123 = vmul.f32 %v114, %v120
    %vm124 = vcmask 130048
    %v125 = vsel %vm124, %v122, 0.0
    %126 = vadd.xlane.f32.xlu0 %v125
    %v127 = vpop.xlane.xlu0 %126
    %v128 = vsel %vm124, %v123, 0.0
    %129 = vadd.xlane.f32.xlu0 %v128
    %v130 = vpop.xlane.xlu0 %129
    %v133 = vlaneseq
    %v134 = vand.u32 %v133, 127
    %v135 = vlaneseq
    %v136 = vshrl.u32 %v135, 7
    %v137 = vsub.s32 %v134, %v136
    %v138 = vrot.slane %v127, %v137
    %v139 = vlaneseq
    %v140 = vshrl.u32 %v139, 7
    %v141 = vsub.s32 %v134, %v140
    %v142 = vrot.slane %v130, %v141
    %vm143 = vcmask 1041409
    %v144 = vsel %vm143, %v142, %v138
    %vm146 = vcmask 58368
    %v147 = vsel %vm146, %v144, -inf
    %148 = vmax.xlane.f32.xlu0 %v147
    %v149 = vpop.xlane.xlu0 %148
    %v151 = vlaneseq
    %v152 = vshrl.u32 %v151, 7
    %v153 = vsub.s32 0, %v152
    %v154 = vrot.slane %v149, %v153
    %v155 = vlaneseq
    %v156 = vshrl.u32 %v155, 7
    %v157 = vsub.s32 1, %v156
    %v158 = vrot.slane %v149, %v157
    %v161 = vsub.f32 %v127, %v154
    %v162 = vsub.f32 %v130, %v158
    %v163 = vmul.f32 %v161, 1.442695
    %v164 = vpow.pop %v163
    %v165 = vmul.f32 %v162, 1.442695
    %v166 = vpow.pop %v165
    %169 = vset.pattern.permute.xlu0 0
    %170 = vperm.xlu0 %169, %v164
    %v171 = vpop.permute.xlu0 %170
    %172 = vset.pattern.permute.xlu0 0
    %173 = vperm.xlu0 %172, %v166
    %v174 = vpop.permute.xlu0 %173
    %v175 = vlaneseq
    %v176 = vshrl.u32 %v175, 7
    %v177 = vsub.s32 %v134, %v176
    %v178 = vrot.slane %v171, %v177
    %v179 = vlaneseq
    %v180 = vshrl.u32 %v179, 7
    %v181 = vsub.s32 %v134, %v180
    %v182 = vrot.slane %v174, %v181
    %v183 = vsel %vm143, %v182, %v178
    %v185 = vsel %vm146, %v183, 0.0
    %186 = vadd.xlane.f32.xlu0 %v185
    %v187 = vpop.xlane.xlu0 %186
    %v189 = vlaneseq
    %v190 = vshrl.u32 %v189, 7
    %v191 = vsub.s32 0, %v190
    %v192 = vrot.slane %v187, %v191
    %v193 = vlaneseq
    %v194 = vshrl.u32 %v193, 7
    %v195 = vsub.s32 1, %v194
    %v196 = vrot.slane %v187, %v195
    %v199 = vrcp.pop %v192
    %v200 = vmul.f32 %v164, %v199
    %v201 = vrcp.pop %v196
    %v202 = vmul.f32 %v166, %v201
    %204 = vset.pattern.permute.xlu0 0
    %205 = vperm.xlu0 %204, %v200
    %v206 = vpop.permute.xlu0 %205
    %209 = vset.pattern.permute.xlu0 0
    %210 = vperm.xlu0 %209, %v202
    %v211 = vpop.permute.xlu0 %210
    %v213 = vmul.f32 %v206, %v18
    %v214 = vmul.f32 %v211, %v19
    %v215 = vsel %vm31, %v213, 0.0
    %v216 = vrot.slane %v215, 4
    %v217 = vadd.f32 %v215, %v216
    %v218 = vrot.slane %v217, 2
    %v219 = vadd.f32 %v217, %v218
    %v220 = vrot.slane %v219, 1
    %v221 = vadd.f32 %v219, %v220
    %v222 = vsel %vm31, %v214, 0.0
    %v223 = vrot.slane %v222, 4
    %v224 = vadd.f32 %v222, %v223
    %v225 = vrot.slane %v224, 2
    %v226 = vadd.f32 %v224, %v225
    %v227 = vrot.slane %v226, 1
    %v228 = vadd.f32 %v226, %v227
    %v231 = vsel %vm143, %v228, %v221
    %vm233 = vcmask 254976
    %234 = vst.msk [vmem:[#allocation2] sm:$0x3] %vm233, %v231
    // Predicated region
    $region18: #{tpu_custom_call.1} parent=1 // pred_check
      _
    $region19: #{tpu_custom_call.1} parent=1 // pred_check_branch
      %236 = sbr.rel (0) target = $region21
    $region20: #{tpu_custom_call.1} parent=1 // pred_region
      %s238 = ssub.s32 32, 32
      %239 = vsyncadd [#allocation3], %s238
      %s241 = sshll.u32 [#allocation2], 4
      %s242 = int_to_ptr.vmem [resolvable:$true] %s241
      %244 = dma.vmem_to_hbm [thread:$0]  %s242, 32, %s4, [#allocation3]
    $region21: #{tpu_custom_call.1} parent=1 // pred_fallthru
      _
    // Predicated region
    $region22: #{tpu_custom_call.1} parent=1 // pred_check
      _
    $region23: #{tpu_custom_call.1} parent=1 // pred_check_branch
      %246 = sbr.rel (0) target = $region25
    $region24: #{tpu_custom_call.1} parent=1 // pred_region
      %247 = dma.done [#allocation3], 32
    $region25: #{tpu_custom_call.1} parent=1 // pred_fallthru
      _
    %248 = vsyncpa [#allocation3], 1

</llo_original>
